<compile_context>
chip_gen: v5e
topology: v5e:2x2
jax: 0.10.0
libtpu: 0.0.40
codegen_flags: <defaults>
</compile_context>

<pallas_src>
import functools

import jax
import jax.numpy as jnp
from jax.experimental import pallas as pl
from jax.experimental.pallas import tpu as pltpu


def _round_up(x, m):
    return ((x + m - 1) // m) * m


def _classifier_kernel(x_ref, w1_ref, b1_ref, w2_ref, b2_ref, fc_ref, mlp_ref):
    """One row-tile: fc = relu(x@W1+b1); logits = fc@W2+b2.

    Two separate outputs, one full-block unmasked store each.
    """
    x = x_ref[...]

    # fc_layer + ReLU (MXU matmul, f32 accumulation; bias/ReLU in f32 on VPU).
    fc = jnp.maximum(
        jnp.dot(x, w1_ref[...], preferred_element_type=jnp.float32)
        + b1_ref[...].astype(jnp.float32),
        0.0)

    # mlp_layer (second MXU matmul, f32 accumulation).
    logits = (jnp.dot(fc.astype(w2_ref.dtype), w2_ref[...],
                      preferred_element_type=jnp.float32)
              + b2_ref[...].astype(jnp.float32))

    fc_ref[...] = fc.astype(fc_ref.dtype)
    mlp_ref[...] = logits.astype(mlp_ref.dtype)


def classifier_multiemo_forward(x, w_fc, b_fc, w_mlp, b_mlp, *,
                                tile_n=2048, compute_dtype=jnp.bfloat16):
    """fc -> relu -> mlp in one fused Pallas kernel; argmax in the wrapper.

    x:     [N, D_in]
    w_fc:  [D_in, H]      b_fc: [1, H]   (f32)
    w_mlp: [H, T]         b_mlp:[1, T]   (f32)
    returns (pred [N] int32,
             {'fc_outputs': [N,H] compute_dtype, 'mlp_outputs': [N,T] f32})
    """
    N, D_in = x.shape
    H = w_fc.shape[1]
    T = w_mlp.shape[1]

    # Halve the dominant HBM stream (x read) and weight reads; MXU takes bf16
    # natively on all generations.  Accumulation stays f32 inside the kernel.
    if compute_dtype is not None:
        x = x.astype(compute_dtype)
        w_fc = w_fc.astype(compute_dtype)
        w_mlp = w_mlp.astype(compute_dtype)
    fc_out_dtype = x.dtype          # post-ReLU activation: narrow storage is fine

    # Row tile: as large as requested (few grid steps, big DMAs — best for
    # single-TC v5e/v6e), but capped at ceil(N/2) so the grid has >= 2 steps
    # whenever possible and both v7x TensorCores get rows.
    n8 = _round_up(max(N, 1), 8)
    tile = min(_round_up(tile_n, 8), n8)
    if n8 > 8:
        tile = min(tile, _round_up(pl.cdiv(n8, 2), 8))
    tile = max(tile, 8)
    n_pad = _round_up(N, tile)
    if n_pad != N:
        x = jnp.pad(x, ((0, n_pad - N), (0, 0)))

    grid = (n_pad // tile,)

    x_sz = jnp.dtype(x.dtype).itemsize
    w_sz = jnp.dtype(w_fc.dtype).itemsize
    fc_sz = jnp.dtype(fc_out_dtype).itemsize
    cost = pl.CostEstimate(
        flops=2 * n_pad * (D_in * H + H * T),
        transcendentals=0,
        bytes_accessed=(n_pad * D_in * x_sz                      # x read
                        + (D_in * H + H * T) * w_sz + (H + T) * 4  # params
                        + n_pad * (H * fc_sz + T * 4)),          # outputs
    )

    fc_out, mlp_out = pl.pallas_call(
        _classifier_kernel,
        out_shape=(jax.ShapeDtypeStruct((n_pad, H), fc_out_dtype),
                   jax.ShapeDtypeStruct((n_pad, T), jnp.float32)),
        grid_spec=pltpu.PrefetchScalarGridSpec(
            num_scalar_prefetch=0,
            grid=grid,
            in_specs=[
                pl.BlockSpec((tile, D_in), lambda i: (i, 0)),   # x row-tile
                pl.BlockSpec((D_in, H), lambda i: (0, 0)),      # W_fc (resident)
                pl.BlockSpec((1, H), lambda i: (0, 0)),         # b_fc
                pl.BlockSpec((H, T), lambda i: (0, 0)),         # W_mlp
                pl.BlockSpec((1, T), lambda i: (0, 0)),         # b_mlp
            ],
            out_specs=[
                pl.BlockSpec((tile, H), lambda i: (i, 0)),      # fc_outputs
                pl.BlockSpec((tile, T), lambda i: (i, 0)),      # mlp_outputs
            ],
        ),
        compiler_params=pltpu.CompilerParams(
            dimension_semantics=("parallel",)),
        cost_estimate=cost,
    )(x, w_fc, b_fc, w_mlp, b_mlp)

    fc_out = fc_out[:N]                      # drop padded rows
    mlp_out = mlp_out[:N]
    # TODO(synk): argmax could be folded into the kernel for tiny N; at
    # realistic N this small extra pass over [N, T] is noise.
    pred = jnp.argmax(mlp_out, axis=-1).astype(jnp.int32)
    return pred, {"fc_outputs": fc_out, "mlp_outputs": mlp_out}


def _reference_forward(x, w_fc, b_fc, w_mlp, b_mlp, compute_dtype=None):
    """Pure-JAX reference, replicating the kernel's quantization choices."""
    if compute_dtype is not None:
        x = x.astype(compute_dtype).astype(jnp.float32)
        w_fc = w_fc.astype(compute_dtype).astype(jnp.float32)
        w_mlp = w_mlp.astype(compute_dtype).astype(jnp.float32)
    fc = jnp.maximum(x @ w_fc + b_fc, 0.0)
    fc_q = fc if compute_dtype is None else fc.astype(compute_dtype).astype(jnp.float32)
    mlp = fc_q @ w_mlp + b_mlp
    return jnp.argmax(mlp, axis=-1).astype(jnp.int32), fc, mlp


if __name__ == "__main__":
    # Module hyper-params (small, consistent with the PyTorch __init__):
    inter_size = 32
    num_mod = 3           # args.use_speaker in ['add', 'no']
    hidden_size = 32
    tag_size = 7
    n_nodes = 200         # number of utterance nodes after dim-concat

    d_in = inter_size * num_mod  # fc_layer input: int(inter_size * num_mod)

    key = jax.random.PRNGKey(0)
    kx, k1, k2, k3, k4 = jax.random.split(key, 5)

    x = jax.random.normal(kx, (n_nodes, d_in), dtype=jnp.float32)
    w_fc = jax.random.uniform(k1, (d_in, hidden_size), jnp.float32,
                              -1.0 / d_in ** 0.5, 1.0 / d_in ** 0.5)
    b_fc = jax.random.uniform(k2, (1, hidden_size), jnp.float32,
                              -1.0 / d_in ** 0.5, 1.0 / d_in ** 0.5)
    w_mlp = jax.random.uniform(k3, (hidden_size, tag_size), jnp.float32,
                               -1.0 / hidden_size ** 0.5, 1.0 / hidden_size ** 0.5)
    b_mlp = jax.random.uniform(k4, (1, tag_size), jnp.float32,
                               -1.0 / hidden_size ** 0.5, 1.0 / hidden_size ** 0.5)

    # --- f32 path (exact check) -------------------------------------------
    fwd_f32 = jax.jit(functools.partial(classifier_multiemo_forward,
                                        compute_dtype=jnp.float32))
    pred32, feats32 = fwd_f32(x, w_fc, b_fc, w_mlp, b_mlp)
    jax.block_until_ready((pred32, feats32))
    ref_pred32, ref_fc32, ref_mlp32 = _reference_forward(x, w_fc, b_fc, w_mlp, b_mlp)
    assert pred32.shape == (n_nodes,)
    assert feats32["fc_outputs"].shape == (n_nodes, hidden_size)
    assert feats32["mlp_outputs"].shape == (n_nodes, tag_size)
    assert jnp.array_equal(pred32, ref_pred32), "f32 pred mismatch"
    assert jnp.allclose(feats32["fc_outputs"], ref_fc32, atol=1e-5), "f32 fc mismatch"
    assert jnp.allclose(feats32["mlp_outputs"], ref_mlp32, atol=1e-5), "f32 mlp mismatch"

    # --- bf16 path (default, perf-tuned) ------------------------------------
    fwd_bf16 = jax.jit(classifier_multiemo_forward)
    pred, feats = fwd_bf16(x, w_fc, b_fc, w_mlp, b_mlp)
    jax.block_until_ready((pred, feats))
    ref_pred, ref_fc, ref_mlp = _reference_forward(
        x, w_fc, b_fc, w_mlp, b_mlp, compute_dtype=jnp.bfloat16)
    assert pred.shape == (n_nodes,)
    assert feats["fc_outputs"].shape == (n_nodes, hidden_size)
    assert feats["mlp_outputs"].shape == (n_nodes, tag_size)
    assert jnp.array_equal(pred, ref_pred), "bf16 pred mismatch"
    assert jnp.allclose(feats["fc_outputs"].astype(jnp.float32), ref_fc,
                        atol=5e-2, rtol=2e-2), "bf16 fc mismatch"
    assert jnp.allclose(feats["mlp_outputs"], ref_mlp,
                        atol=5e-3, rtol=1e-3), "bf16 mlp mismatch"

    print("KERNEL_OK")
</pallas_src>

<mosaic_0001>
module attributes {stable_mosaic.version = 11 : i64} {
  func.func @_classifier_kernel(%arg0: i32, %arg1: memref<104x96xf32, #tpu.memory_space<vmem>>, %arg2: memref<96x32xf32, #tpu.memory_space<vmem>>, %arg3: memref<1x32xf32, #tpu.memory_space<vmem>>, %arg4: memref<32x7xf32, #tpu.memory_space<vmem>>, %arg5: memref<1x7xf32, #tpu.memory_space<vmem>>, %arg6: memref<104x32xf32, #tpu.memory_space<vmem>>, %arg7: memref<104x7xf32, #tpu.memory_space<vmem>>) attributes {dimension_semantics = [#tpu.dimension_semantics<parallel>], iteration_bounds = array<i64: 2>, scalar_prefetch = 0 : i64, scratch_operands = 0 : i64, tpu.core_type = #tpu.core_type<tc>, window_params = [{transform_indices = @transform_0, window_bounds = array<i64: 104, 96>}, {pipeline_mode = #tpu.pipeline_mode<synchronous>, transform_indices = @transform_1, window_bounds = array<i64: 96, 32>}, {pipeline_mode = #tpu.pipeline_mode<synchronous>, transform_indices = @transform_2, window_bounds = array<i64: 1, 32>}, {pipeline_mode = #tpu.pipeline_mode<synchronous>, transform_indices = @transform_3, window_bounds = array<i64: 32, 7>}, {pipeline_mode = #tpu.pipeline_mode<synchronous>, transform_indices = @transform_4, window_bounds = array<i64: 1, 7>}, {transform_indices = @transform_5, window_bounds = array<i64: 104, 32>}, {transform_indices = @transform_6, window_bounds = array<i64: 104, 7>}]} {
    %c0 = arith.constant 0 : index
    %c0_0 = arith.constant 0 : index
    %0 = vector.load %arg1[%c0, %c0_0] : memref<104x96xf32, #tpu.memory_space<vmem>>, vector<104x96xf32>
    %c0_1 = arith.constant 0 : index
    %c0_2 = arith.constant 0 : index
    %1 = vector.load %arg2[%c0_1, %c0_2] : memref<96x32xf32, #tpu.memory_space<vmem>>, vector<96x32xf32>
    %cst = arith.constant dense<0.000000e+00> : vector<104x32xf32>
    %2 = tpu.matmul %0, %1, %cst {dimension_numbers = #tpu.dot_dimension_numbers<[1], [0], [0], [1], [0, 0, 1, 1], [], []>} : vector<104x96xf32>, vector<96x32xf32>, vector<104x32xf32> -> vector<104x32xf32>
    %c0_3 = arith.constant 0 : index
    %c0_4 = arith.constant 0 : index
    %3 = vector.load %arg3[%c0_3, %c0_4] : memref<1x32xf32, #tpu.memory_space<vmem>>, vector<1x32xf32>
    %4 = vector.broadcast %3 : vector<1x32xf32> to vector<104x32xf32>
    %5 = arith.addf %2, %4 : vector<104x32xf32>
    %cst_5 = arith.constant 0.000000e+00 : f32
    %6 = vector.broadcast %cst_5 : f32 to vector<104x32xf32>
    %7 = arith.maximumf %5, %6 : vector<104x32xf32>
    %c0_6 = arith.constant 0 : index
    %c0_7 = arith.constant 0 : index
    %8 = vector.load %arg4[%c0_6, %c0_7] : memref<32x7xf32, #tpu.memory_space<vmem>>, vector<32x7xf32>
    %cst_8 = arith.constant dense<0.000000e+00> : vector<104x7xf32>
    %9 = tpu.matmul %7, %8, %cst_8 {dimension_numbers = #tpu.dot_dimension_numbers<[1], [0], [0], [1], [0, 0, 1, 1], [], []>} : vector<104x32xf32>, vector<32x7xf32>, vector<104x7xf32> -> vector<104x7xf32>
    %c0_9 = arith.constant 0 : index
    %c0_10 = arith.constant 0 : index
    %10 = vector.load %arg5[%c0_9, %c0_10] : memref<1x7xf32, #tpu.memory_space<vmem>>, vector<1x7xf32>
    %11 = vector.broadcast %10 : vector<1x7xf32> to vector<104x7xf32>
    %12 = arith.addf %9, %11 : vector<104x7xf32>
    %c0_11 = arith.constant 0 : index
    %c0_12 = arith.constant 0 : index
    %13 = vector.load %arg6[%c0_11, %c0_12] : memref<104x32xf32, #tpu.memory_space<vmem>>, vector<104x32xf32>
    tpu.vector_store %arg6[%c0_11, %c0_12], %7 {strides = array<i32>} : memref<104x32xf32, #tpu.memory_space<vmem>>, vector<104x32xf32>,
    %c0_13 = arith.constant 0 : index
    %c0_14 = arith.constant 0 : index
    %14 = vector.load %arg7[%c0_13, %c0_14] : memref<104x7xf32, #tpu.memory_space<vmem>>, vector<104x7xf32>
    tpu.vector_store %arg7[%c0_13, %c0_14], %12 {strides = array<i32>} : memref<104x7xf32, #tpu.memory_space<vmem>>, vector<104x7xf32>,
    return
  }
  func.func @transform_0(%arg0: i32) -> (i32, i32) {
    %c0_i32 = arith.constant 0 : i32
    %c0_i32_0 = arith.constant 0 : i32
    return %arg0, %c0_i32 : i32, i32
  }
  func.func @transform_1(%arg0: i32) -> (i32, i32) {
    %c0_i32 = arith.constant 0 : i32
    %c0_i32_0 = arith.constant 0 : i32
    %c0_i32_1 = arith.constant 0 : i32
    return %c0_i32, %c0_i32_0 : i32, i32
  }
  func.func @transform_2(%arg0: i32) -> (i32, i32) {
    %c0_i32 = arith.constant 0 : i32
    %c0_i32_0 = arith.constant 0 : i32
    %c0_i32_1 = arith.constant 0 : i32
    return %c0_i32, %c0_i32_0 : i32, i32
  }
  func.func @transform_3(%arg0: i32) -> (i32, i32) {
    %c0_i32 = arith.constant 0 : i32
    %c0_i32_0 = arith.constant 0 : i32
    %c0_i32_1 = arith.constant 0 : i32
    return %c0_i32, %c0_i32_0 : i32, i32
  }
  func.func @transform_4(%arg0: i32) -> (i32, i32) {
    %c0_i32 = arith.constant 0 : i32
    %c0_i32_0 = arith.constant 0 : i32
    %c0_i32_1 = arith.constant 0 : i32
    return %c0_i32, %c0_i32_0 : i32, i32
  }
  func.func @transform_5(%arg0: i32) -> (i32, i32) {
    %c0_i32 = arith.constant 0 : i32
    %c0_i32_0 = arith.constant 0 : i32
    return %arg0, %c0_i32 : i32, i32
  }
  func.func @transform_6(%arg0: i32) -> (i32, i32) {
    %c0_i32 = arith.constant 0 : i32
    %c0_i32_0 = arith.constant 0 : i32
    return %arg0, %c0_i32 : i32, i32
  }
}

</mosaic_0001>

<llo_original>
// kernel: classifier_multiemo_forward.1
$region0: #{classifier_multiemo_forward.1}
  #allocation0 [shape = 'u32[]', space=smem, size = 0x4, offset = 0x4, fixed_abs, tag = 'smem constant byte address 0x4 - core index']
  #allocation1 [shape = 'u32[72,128]{1,0:T(1,128)}', space=vmem, size = 0x9000, scoped, tag = 'internal scratch']
  %s0 = inlined_call_operand.vmem [shape: f32[208,96], index: 0, kind: input, shape index: {}]
  %s1 = inlined_call_operand.vmem [shape: f32[96,32], index: 1, kind: input, shape index: {}]
  %s2 = inlined_call_operand.vmem [shape: f32[1,32], index: 2, kind: input, shape index: {}]
  %s3 = inlined_call_operand.vmem [shape: f32[32,7], index: 3, kind: input, shape index: {}]
  %s4 = inlined_call_operand.vmem [shape: f32[1,7], index: 4, kind: input, shape index: {}]
  %s5 = inlined_call_operand.vmem [shape: f32[208,32], index: 5, kind: output, shape index: {0}]
  %s6 = inlined_call_operand.vmem [shape: f32[208,7], index: 6, kind: output, shape index: {1}]
  %7 = xla_tuple %s5, %s6
  %s8 = sld [smem:[#allocation0]]
  $region61: #{classifier_multiemo_forward.1} parent=0
    _
  %s10 = ssub.s32 1, %s8
  %s11 = scalar_select 0, %s10, %s8
  loop: start=0, step=1, limit=4
  $region2: #{classifier_multiemo_forward.1} parent=0 // loop_pre_header
    _
  $region3: #{classifier_multiemo_forward.1} parent=0 // loop_header
    %s13 = sphi 0, %s17
    %p14 = scmp.ge.s32.totalorder %s13, 4
    %s23 = sphi 0, %s25
    %s26 = sphi 0, %s23
    %s27 = sphi 0, %s26
    %s43 = sphi 0, %s27
    %s47 = sphi 0, %s47
    %s49 = sphi 0, %s47
    %s50 = sphi 0, %s49
    %s64 = sphi 0, %s50
    %s68 = sphi 0, %s68
    %s70 = sphi 0, %s68
    %s71 = sphi 0, %s70
    %s85 = sphi 0, %s71
    %s89 = sphi 0, %s89
    %s91 = sphi 0, %s89
    %s92 = sphi 0, %s91
    %s106 = sphi 0, %s92
    %s110 = sphi 0, %s110
    %s112 = sphi 0, %s110
    %s113 = sphi 0, %s112
    %s127 = sphi 0, %s113
    %s133 = sphi 0, %s135
    %s136 = sphi 0, %s133
    %s137 = sphi 0, %s136
    %s153 = sphi 0, %s137
    %s159 = sphi 0, %s161
    %s162 = sphi 0, %s159
    %s163 = sphi 0, %s162
    %s179 = sphi 0, %s163
  $region4: #{classifier_multiemo_forward.1} parent=0 // loop_header_branch
    %16 = sbr.rel (%p14) target = $region8
  $region5: #{classifier_multiemo_forward.1} parent=0 // loop_body
    %s18 = ssub.s32 %s13, 1
    %s19 = ssub.s32 %s13, 2
    %s20 = sadd.s32 %s13, 1
    %s21 = ssub.s32 %s13, %s20
    %p22 = scmp.eq.s32.totalorder %s21, 0
    %s24 = sadd.s32 %s23, 1
    %s25 = scalar_select %p22, %s23, %s24
    %p28 = pneg %p22
    %p29 = scmp.eq.s32.totalorder %s13, 1
    %p30 = por %p28, %p29
    %p31 = scmp.ne.s32.totalorder %s23, %s26
    %p32 = scmp.eq.s32.totalorder %s13, 0
    %p33 = por %p31, %p32
    %p34 = scmp.ne.s32.totalorder %s23, %s26
    %p35 = scmp.eq.s32.totalorder %s18, 1
    %p36 = por %p34, %p35
    %p37 = scmp.ne.s32.totalorder %s26, %s27
    %p38 = scmp.eq.s32.totalorder %s18, 0
    %p39 = por %p37, %p38
    %p40 = scmp.ne.s32.totalorder %s26, %s27
    %p41 = scmp.eq.s32.totalorder %s19, 1
    %p42 = por %p40, %p41
    %p44 = scmp.ne.s32.totalorder %s27, %s43
    %p45 = scmp.eq.s32.totalorder %s19, 0
    %p46 = por %p44, %p45
    %s48 = sadd.s32 %s47, 1
    %p51 = scmp.eq.s32.totalorder %s13, 1
    %p52 = scmp.ne.s32.totalorder %s47, %s49
    %p53 = scmp.eq.s32.totalorder %s13, 0
    %p54 = por %p52, %p53
    %p55 = scmp.ne.s32.totalorder %s47, %s49
    %p56 = scmp.eq.s32.totalorder %s18, 1
    %p57 = por %p55, %p56
    %p58 = scmp.ne.s32.totalorder %s49, %s50
    %p59 = scmp.eq.s32.totalorder %s18, 0
    %p60 = por %p58, %p59
    %p61 = scmp.ne.s32.totalorder %s49, %s50
    %p62 = scmp.eq.s32.totalorder %s19, 1
    %p63 = por %p61, %p62
    %p65 = scmp.ne.s32.totalorder %s50, %s64
    %p66 = scmp.eq.s32.totalorder %s19, 0
    %p67 = por %p65, %p66
    %s69 = sadd.s32 %s68, 1
    %p72 = scmp.eq.s32.totalorder %s13, 1
    %p73 = scmp.ne.s32.totalorder %s68, %s70
    %p74 = scmp.eq.s32.totalorder %s13, 0
    %p75 = por %p73, %p74
    %p76 = scmp.ne.s32.totalorder %s68, %s70
    %p77 = scmp.eq.s32.totalorder %s18, 1
    %p78 = por %p76, %p77
    %p79 = scmp.ne.s32.totalorder %s70, %s71
    %p80 = scmp.eq.s32.totalorder %s18, 0
    %p81 = por %p79, %p80
    %p82 = scmp.ne.s32.totalorder %s70, %s71
    %p83 = scmp.eq.s32.totalorder %s19, 1
    %p84 = por %p82, %p83
    %p86 = scmp.ne.s32.totalorder %s71, %s85
    %p87 = scmp.eq.s32.totalorder %s19, 0
    %p88 = por %p86, %p87
    %s90 = sadd.s32 %s89, 1
    %p93 = scmp.eq.s32.totalorder %s13, 1
    %p94 = scmp.ne.s32.totalorder %s89, %s91
    %p95 = scmp.eq.s32.totalorder %s13, 0
    %p96 = por %p94, %p95
    %p97 = scmp.ne.s32.totalorder %s89, %s91
    %p98 = scmp.eq.s32.totalorder %s18, 1
    %p99 = por %p97, %p98
    %p100 = scmp.ne.s32.totalorder %s91, %s92
    %p101 = scmp.eq.s32.totalorder %s18, 0
    %p102 = por %p100, %p101
    %p103 = scmp.ne.s32.totalorder %s91, %s92
    %p104 = scmp.eq.s32.totalorder %s19, 1
    %p105 = por %p103, %p104
    %p107 = scmp.ne.s32.totalorder %s92, %s106
    %p108 = scmp.eq.s32.totalorder %s19, 0
    %p109 = por %p107, %p108
    %s111 = sadd.s32 %s110, 1
    %p114 = scmp.eq.s32.totalorder %s13, 1
    %p115 = scmp.ne.s32.totalorder %s110, %s112
    %p116 = scmp.eq.s32.totalorder %s13, 0
    %p117 = por %p115, %p116
    %p118 = scmp.ne.s32.totalorder %s110, %s112
    %p119 = scmp.eq.s32.totalorder %s18, 1
    %p120 = por %p118, %p119
    %p121 = scmp.ne.s32.totalorder %s112, %s113
    %p122 = scmp.eq.s32.totalorder %s18, 0
    %p123 = por %p121, %p122
    %p124 = scmp.ne.s32.totalorder %s112, %s113
    %p125 = scmp.eq.s32.totalorder %s19, 1
    %p126 = por %p124, %p125
    %p128 = scmp.ne.s32.totalorder %s113, %s127
    %p129 = scmp.eq.s32.totalorder %s19, 0
    %p130 = por %p128, %p129
    %s131 = ssub.s32 %s13, %s20
    %p132 = scmp.eq.s32.totalorder %s131, 0
    %s134 = sadd.s32 %s133, 1
    %s135 = scalar_select %p132, %s133, %s134
    %p138 = pneg %p132
    %p139 = scmp.eq.s32.totalorder %s13, 1
    %p140 = por %p138, %p139
    %p141 = scmp.ne.s32.totalorder %s133, %s136
    %p142 = scmp.eq.s32.totalorder %s13, 0
    %p143 = por %p141, %p142
    %p144 = scmp.ne.s32.totalorder %s133, %s136
    %p145 = scmp.eq.s32.totalorder %s18, 1
    %p146 = por %p144, %p145
    %p147 = scmp.ne.s32.totalorder %s136, %s137
    %p148 = scmp.eq.s32.totalorder %s18, 0
    %p149 = por %p147, %p148
    %p150 = scmp.ne.s32.totalorder %s136, %s137
    %p151 = scmp.eq.s32.totalorder %s19, 1
    %p152 = por %p150, %p151
    %p154 = scmp.ne.s32.totalorder %s137, %s153
    %p155 = scmp.eq.s32.totalorder %s19, 0
    %p156 = por %p154, %p155
    %s157 = ssub.s32 %s13, %s20
    %p158 = scmp.eq.s32.totalorder %s157, 0
    %s160 = sadd.s32 %s159, 1
    %s161 = scalar_select %p158, %s159, %s160
    %p164 = pneg %p158
    %p165 = scmp.eq.s32.totalorder %s13, 1
    %p166 = por %p164, %p165
    %p167 = scmp.ne.s32.totalorder %s159, %s162
    %p168 = scmp.eq.s32.totalorder %s13, 0
    %p169 = por %p167, %p168
    %p170 = scmp.ne.s32.totalorder %s159, %s162
    %p171 = scmp.eq.s32.totalorder %s18, 1
    %p172 = por %p170, %p171
    %p173 = scmp.ne.s32.totalorder %s162, %s163
    %p174 = scmp.eq.s32.totalorder %s18, 0
    %p175 = por %p173, %p174
    %p176 = scmp.ne.s32.totalorder %s162, %s163
    %p177 = scmp.eq.s32.totalorder %s19, 1
    %p178 = por %p176, %p177
    %p180 = scmp.ne.s32.totalorder %s163, %s179
    %p181 = scmp.eq.s32.totalorder %s19, 0
    %p182 = por %p180, %p181
    %p183 = scmp.le.s32.totalorder 1, %s13
    %p184 = scmp.lt.s32.totalorder %s13, 3
    %p185 = pnand %p183, %p184
    %p186 = pneg %p185
    // Predicated region
    $region9: #{classifier_multiemo_forward.1} parent=5 // pred_check
      _
    $region10: #{classifier_multiemo_forward.1} parent=5 // pred_check_branch
      %188 = sbr.rel (%p185) target = $region12
    $region11: #{classifier_multiemo_forward.1} parent=5 // pred_region
      %s189 = ssub.s32 %s13, 1
      // Predicated region
      $region13: #{classifier_multiemo_forward.1} parent=11 // pred_check
        %p190 = pneg %p60
      $region14: #{classifier_multiemo_forward.1} parent=11 // pred_check_branch
        %192 = sbr.rel (%p190) target = $region16
      $region15: #{classifier_multiemo_forward.1} parent=11 // pred_region
        _
      $region16: #{classifier_multiemo_forward.1} parent=11 // pred_fallthru
        _
      // Predicated region
      $region17: #{classifier_multiemo_forward.1} parent=11 // pred_check
        %p193 = pneg %p81
      $region18: #{classifier_multiemo_forward.1} parent=11 // pred_check_branch
        %195 = sbr.rel (%p193) target = $region20
      $region19: #{classifier_multiemo_forward.1} parent=11 // pred_region
        _
      $region20: #{classifier_multiemo_forward.1} parent=11 // pred_fallthru
        _
      // Predicated region
      $region21: #{classifier_multiemo_forward.1} parent=11 // pred_check
        %p196 = pneg %p102
      $region22: #{classifier_multiemo_forward.1} parent=11 // pred_check_branch
        %198 = sbr.rel (%p196) target = $region24
      $region23: #{classifier_multiemo_forward.1} parent=11 // pred_region
        _
      $region24: #{classifier_multiemo_forward.1} parent=11 // pred_fallthru
        _
      // Predicated region
      $region25: #{classifier_multiemo_forward.1} parent=11 // pred_check
        %p199 = pneg %p123
      $region26: #{classifier_multiemo_forward.1} parent=11 // pred_check_branch
        %201 = sbr.rel (%p199) target = $region28
      $region27: #{classifier_multiemo_forward.1} parent=11 // pred_region
        _
      $region28: #{classifier_multiemo_forward.1} parent=11 // pred_fallthru
        _
    $region12: #{classifier_multiemo_forward.1} parent=5 // pred_fallthru
      _
    %p202 = scmp.lt.s32.totalorder %s13, 2
    // Predicated region
    $region29: #{classifier_multiemo_forward.1} parent=5 // pred_check
      %p203 = pneg %p202
    $region30: #{classifier_multiemo_forward.1} parent=5 // pred_check_branch
      %205 = sbr.rel (%p203) target = $region32
    $region31: #{classifier_multiemo_forward.1} parent=5 // pred_region
      // Predicated region
      $region33: #{classifier_multiemo_forward.1} parent=31 // pred_check
        %p206 = pneg %p33
      $region34: #{classifier_multiemo_forward.1} parent=31 // pred_check_branch
        %208 = sbr.rel (%p206) target = $region36
      $region35: #{classifier_multiemo_forward.1} parent=31 // pred_region
        %s209 = smul.u32 13, %s13
        %p210 = scmp.lt.s32.totalorder %s209, 25
        %s211 = scalar_select %p210, %s209, 25
        %s212 = smul.addr %s211, 8
        %s213 = scalar_lea.vmem %s0, %s212
        %s214 = smul.u32 13, %s13
      $region36: #{classifier_multiemo_forward.1} parent=31 // pred_fallthru
        _
    $region32: #{classifier_multiemo_forward.1} parent=5 // pred_fallthru
      _
    %p215 = scmp.le.s32.totalorder 1, %s13
    %p216 = scmp.lt.s32.totalorder %s13, 3
    %p217 = pnand %p215, %p216
    %p218 = pneg %p217
    // Predicated region
    $region37: #{classifier_multiemo_forward.1} parent=5 // pred_check
      _
    $region38: #{classifier_multiemo_forward.1} parent=5 // pred_check_branch
      %220 = sbr.rel (%p217) target = $region40
    $region39: #{classifier_multiemo_forward.1} parent=5 // pred_region
      %s221 = ssub.s32 %s13, 1
      %s222 = smul.u32 13, %s18
      %p223 = scmp.lt.s32.totalorder %s222, 25
      %s224 = scalar_select %p223, %s222, 25
      %s225 = smul.addr %s224, 8
      %s226 = scalar_lea.vmem %s0, %s225
      %p227 = pneg %p39
      %p228 = pneg %p36
      %p229 = pneg %p60
      %p230 = pneg %p57
      %p231 = pneg %p81
      %p232 = pneg %p78
      %p233 = pneg %p102
      %p234 = pneg %p99
      %p235 = pneg %p123
      %p236 = pneg %p120
      %p237 = pneg %p149
      %p238 = pneg %p146
      %s239 = smul.u32 13, %s18
      %p240 = scmp.lt.s32.totalorder %s239, 25
      %s241 = scalar_select %p240, %s239, 25
      %s242 = smul.addr %s241, 8
      %s243 = scalar_lea.vmem %s5, %s242
      %p244 = pneg %p175
      %p245 = pneg %p172
      %s246 = smul.u32 13, %s18
      %p247 = scmp.lt.s32.totalorder %s246, 25
      %s248 = scalar_select %p247, %s246, 25
      %s249 = smul.addr %s248, 8
      %s250 = scalar_lea.vmem %s6, %s249
      %s251 = smul.u32 13, %s18
      %p252 = scmp.lt.s32.totalorder %s251, 25
      %s253 = scalar_select %p252, %s251, 25
      %s254 = smul.addr %s253, 8
      %s255 = scalar_lea.vmem %s0, %s254
      %s256 = smul.u32 13, %s18
      %s257 = smul.u32 13, %s18
      %p258 = scmp.lt.s32.totalorder %s257, 25
      %s259 = scalar_select %p258, %s257, 25
      %s260 = smul.addr %s259, 8
      %s261 = scalar_lea.vmem %s5, %s260
      %s262 = smul.u32 13, %s18
      %s263 = smul.u32 13, %s18
      %p264 = scmp.lt.s32.totalorder %s263, 25
      %s265 = scalar_select %p264, %s263, 25
      %s266 = smul.addr %s265, 8
      %s267 = scalar_lea.vmem %s6, %s266
      %s268 = smul.u32 13, %s18
      %v269 = vld [vmem:[%s255] sm:$0xff]
      %v270 = vld [vmem:[%s255 + $0x8] sm:$0xff]
      %v271 = vld [vmem:[%s255 + $0x10] sm:$0xff]
      %v272 = vld [vmem:[%s255 + $0x18] sm:$0xff]
      %v273 = vld [vmem:[%s255 + $0x20] sm:$0xff]
      %v274 = vld [vmem:[%s255 + $0x28] sm:$0xff]
      %v275 = vld [vmem:[%s255 + $0x30] sm:$0xff]
      %v276 = vld [vmem:[%s255 + $0x38] sm:$0xff]
      %v277 = vld [vmem:[%s255 + $0x40] sm:$0xff]
      %v278 = vld [vmem:[%s255 + $0x48] sm:$0xff]
      %v279 = vld [vmem:[%s255 + $0x50] sm:$0xff]
      %v280 = vld [vmem:[%s255 + $0x58] sm:$0xff]
      %v281 = vld [vmem:[%s255 + $0x60] sm:$0xff]
      %v282 = vld [vmem:[%s1] sm:$0xff]
      %v283 = vld [vmem:[%s1 + $0x8] sm:$0xff]
      %v284 = vld [vmem:[%s1 + $0x10] sm:$0xff]
      %v285 = vld [vmem:[%s1 + $0x18] sm:$0xff]
      %v286 = vld [vmem:[%s1 + $0x20] sm:$0xff]
      %v287 = vld [vmem:[%s1 + $0x28] sm:$0xff]
      %v288 = vld [vmem:[%s1 + $0x30] sm:$0xff]
      %v289 = vld [vmem:[%s1 + $0x38] sm:$0xff]
      %v290 = vld [vmem:[%s1 + $0x40] sm:$0xff]
      %v291 = vld [vmem:[%s1 + $0x48] sm:$0xff]
      %v292 = vld [vmem:[%s1 + $0x50] sm:$0xff]
      %v293 = vld [vmem:[%s1 + $0x58] sm:$0xff]
      %v294 = vld [vmem:[%s2] sm:$0x1]
      %v296 = vperm.slane %v294, 0
      %vm298 = vcmask 785408
      %v300 = vsel %vm298, %v269, 0
      %v303 = vsel %vm298, %v270, 0
      %v306 = vsel %vm298, %v271, 0
      %v309 = vsel %vm298, %v272, 0
      %v312 = vsel %vm298, %v273, 0
      %v315 = vsel %vm298, %v274, 0
      %v318 = vsel %vm298, %v275, 0
      %v321 = vsel %vm298, %v276, 0
      %v324 = vsel %vm298, %v277, 0
      %v327 = vsel %vm298, %v278, 0
      %v330 = vsel %vm298, %v279, 0
      %v333 = vsel %vm298, %v280, 0
      %v336 = vsel %vm298, %v281, 0
      %338 = vmatpush.msra.mxu0 0.0
      %339 = vmatpush.msra.mxu0 0.0
      %340 = vmatpush.msra.mxu0 0.0
      %341 = vmatpush.msra.mxu0 0.0
      %342 = vmatpush.msra.mxu0 %v293
      %343 = vmatpush.msra.mxu0 %v292
      %344 = vmatpush.msra.mxu0 %v291
      %345 = vmatpush.msra.mxu0 %v290
      %346 = vmatpush.msra.mxu0 %v289
      %347 = vmatpush.msra.mxu0 %v288
      %348 = vmatpush.msra.mxu0 %v287
      %349 = vmatpush.msra.mxu0 %v286
      %350 = vmatpush.msra.mxu0 %v285
      %351 = vmatpush.msra.mxu0 %v284
      %352 = vmatpush.msra.mxu0 %v283
      %353 = vmatpush.msra.mxu0 %v282
      %354 = vmatmul.f32.gmra.mxu0 %v300
      %v355 = vpop.f32.mrf.mxu0
      %v356 = vadd.f32 %v296, %v355
      %357 = vmatmul.f32.gmra.mxu0 %v303
      %v358 = vpop.f32.mrf.mxu0
      %v359 = vadd.f32 %v296, %v358
      %360 = vmatmul.f32.gmra.mxu0 %v306
      %v361 = vpop.f32.mrf.mxu0
      %v362 = vadd.f32 %v296, %v361
      %363 = vmatmul.f32.gmra.mxu0 %v309
      %v364 = vpop.f32.mrf.mxu0
      %v365 = vadd.f32 %v296, %v364
      %366 = vmatmul.f32.gmra.mxu0 %v312
      %v367 = vpop.f32.mrf.mxu0
      %v368 = vadd.f32 %v296, %v367
      %369 = vmatmul.f32.gmra.mxu0 %v315
      %v370 = vpop.f32.mrf.mxu0
      %v371 = vadd.f32 %v296, %v370
      %372 = vmatmul.f32.gmra.mxu0 %v318
      %v373 = vpop.f32.mrf.mxu0
      %v374 = vadd.f32 %v296, %v373
      %375 = vmatmul.f32.gmra.mxu0 %v321
      %v376 = vpop.f32.mrf.mxu0
      %v377 = vadd.f32 %v296, %v376
      %378 = vmatmul.f32.gmra.mxu0 %v324
      %v379 = vpop.f32.mrf.mxu0
      %v380 = vadd.f32 %v296, %v379
      %381 = vmatmul.f32.gmra.mxu0 %v327
      %v382 = vpop.f32.mrf.mxu0
      %v383 = vadd.f32 %v296, %v382
      %384 = vmatmul.f32.gmra.mxu0 %v330
      %v385 = vpop.f32.mrf.mxu0
      %v386 = vadd.f32 %v296, %v385
      %387 = vmatmul.f32.gmra.mxu0 %v333
      %v388 = vpop.f32.mrf.mxu0
      %v389 = vadd.f32 %v296, %v388
      %390 = vmatmul.f32.gmra.mxu0 %v336
      %v391 = vpop.f32.mrf.mxu0
      %v392 = vadd.f32 %v296, %v391
      %393 = vdwg.mxu0
      %v394 = vmax.f32 %v356, 0.0
      %v395 = vmax.f32 %v359, 0.0
      %v396 = vmax.f32 %v362, 0.0
      %v397 = vmax.f32 %v365, 0.0
      %v398 = vmax.f32 %v368, 0.0
      %v399 = vmax.f32 %v371, 0.0
      %v400 = vmax.f32 %v374, 0.0
      %v401 = vmax.f32 %v377, 0.0
      %v402 = vmax.f32 %v380, 0.0
      %v403 = vmax.f32 %v383, 0.0
      %v404 = vmax.f32 %v386, 0.0
      %v405 = vmax.f32 %v389, 0.0
      %v406 = vmax.f32 %v392, 0.0
      %v407 = vld [vmem:[%s3] sm:$0xff]
      %v408 = vld [vmem:[%s3 + $0x8] sm:$0xff]
      %v409 = vld [vmem:[%s3 + $0x10] sm:$0xff]
      %v410 = vld [vmem:[%s3 + $0x18] sm:$0xff]
      %v411 = vld [vmem:[%s4] sm:$0x1]
      %v413 = vperm.slane %v411, 0
      %vm415 = vcmask 261120
      %v417 = vsel %vm415, %v394, 0
      %v420 = vsel %vm415, %v395, 0
      %v423 = vsel %vm415, %v396, 0
      %v426 = vsel %vm415, %v397, 0
      %v429 = vsel %vm415, %v398, 0
      %v432 = vsel %vm415, %v399, 0
      %v435 = vsel %vm415, %v400, 0
      %v438 = vsel %vm415, %v401, 0
      %v441 = vsel %vm415, %v402, 0
      %v444 = vsel %vm415, %v403, 0
      %v447 = vsel %vm415, %v404, 0
      %v450 = vsel %vm415, %v405, 0
      %v453 = vsel %vm415, %v406, 0
      %455 = vmatpush.msra.mxu0 0.0
      %456 = vmatpush.msra.mxu0 0.0
      %457 = vmatpush.msra.mxu0 0.0
      %458 = vmatpush.msra.mxu0 0.0
      %459 = vmatpush.msra.mxu0 0.0
      %460 = vmatpush.msra.mxu0 0.0
      %461 = vmatpush.msra.mxu0 0.0
      %462 = vmatpush.msra.mxu0 0.0
      %463 = vmatpush.msra.mxu0 0.0
      %464 = vmatpush.msra.mxu0 0.0
      %465 = vmatpush.msra.mxu0 0.0
      %466 = vmatpush.msra.mxu0 0.0
      %467 = vmatpush.msra.mxu0 %v410
      %468 = vmatpush.msra.mxu0 %v409
      %469 = vmatpush.msra.mxu0 %v408
      %470 = vmatpush.msra.mxu0 %v407
      %471 = vmatmul.f32.gmra.mxu0 %v417
      %v472 = vpop.f32.mrf.mxu0
      %v473 = vadd.f32 %v413, %v472
      %474 = vmatmul.f32.gmra.mxu0 %v420
      %v475 = vpop.f32.mrf.mxu0
      %v476 = vadd.f32 %v413, %v475
      %477 = vmatmul.f32.gmra.mxu0 %v423
      %v478 = vpop.f32.mrf.mxu0
      %v479 = vadd.f32 %v413, %v478
      %480 = vmatmul.f32.gmra.mxu0 %v426
      %v481 = vpop.f32.mrf.mxu0
      %v482 = vadd.f32 %v413, %v481
      %483 = vmatmul.f32.gmra.mxu0 %v429
      %v484 = vpop.f32.mrf.mxu0
      %v485 = vadd.f32 %v413, %v484
      %486 = vmatmul.f32.gmra.mxu0 %v432
      %v487 = vpop.f32.mrf.mxu0
      %v488 = vadd.f32 %v413, %v487
      %489 = vmatmul.f32.gmra.mxu0 %v435
      %v490 = vpop.f32.mrf.mxu0
      %v491 = vadd.f32 %v413, %v490
      %492 = vmatmul.f32.gmra.mxu0 %v438
      %v493 = vpop.f32.mrf.mxu0
      %v494 = vadd.f32 %v413, %v493
      %495 = vmatmul.f32.gmra.mxu0 %v441
      %v496 = vpop.f32.mrf.mxu0
      %v497 = vadd.f32 %v413, %v496
      %498 = vmatmul.f32.gmra.mxu0 %v444
      %v499 = vpop.f32.mrf.mxu0
      %v500 = vadd.f32 %v413, %v499
      %501 = vmatmul.f32.gmra.mxu0 %v447
      %v502 = vpop.f32.mrf.mxu0
      %v503 = vadd.f32 %v413, %v502
      %504 = vmatmul.f32.gmra.mxu0 %v450
      %v505 = vpop.f32.mrf.mxu0
      %v506 = vadd.f32 %v413, %v505
      %507 = vmatmul.f32.gmra.mxu0 %v453
      %v508 = vpop.f32.mrf.mxu0
      %v509 = vadd.f32 %v413, %v508
      %510 = vdwg.mxu0
      %511 = vst.msk [vmem:[%s261] sm:$0xff] %vm415, %v394
      %512 = vst.msk [vmem:[%s261 + $0x8] sm:$0xff] %vm415, %v395
      %513 = vst.msk [vmem:[%s261 + $0x10] sm:$0xff] %vm415, %v396
      %514 = vst.msk [vmem:[%s261 + $0x18] sm:$0xff] %vm415, %v397
      %515 = vst.msk [vmem:[%s261 + $0x20] sm:$0xff] %vm415, %v398
      %516 = vst.msk [vmem:[%s261 + $0x28] sm:$0xff] %vm415, %v399
      %517 = vst.msk [vmem:[%s261 + $0x30] sm:$0xff] %vm415, %v400
      %518 = vst.msk [vmem:[%s261 + $0x38] sm:$0xff] %vm415, %v401
      %519 = vst.msk [vmem:[%s261 + $0x40] sm:$0xff] %vm415, %v402
      %520 = vst.msk [vmem:[%s261 + $0x48] sm:$0xff] %vm415, %v403
      %521 = vst.msk [vmem:[%s261 + $0x50] sm:$0xff] %vm415, %v404
      %522 = vst.msk [vmem:[%s261 + $0x58] sm:$0xff] %vm415, %v405
      %523 = vst.msk [vmem:[%s261 + $0x60] sm:$0xff] %vm415, %v406
      %vm524 = vcmask 56320
      %525 = vst.msk [vmem:[%s267] sm:$0xff] %vm524, %v473
      %526 = vst.msk [vmem:[%s267 + $0x8] sm:$0xff] %vm524, %v476
      %527 = vst.msk [vmem:[%s267 + $0x10] sm:$0xff] %vm524, %v479
      %528 = vst.msk [vmem:[%s267 + $0x18] sm:$0xff] %vm524, %v482
      %529 = vst.msk [vmem:[%s267 + $0x20] sm:$0xff] %vm524, %v485
      %530 = vst.msk [vmem:[%s267 + $0x28] sm:$0xff] %vm524, %v488
      %531 = vst.msk [vmem:[%s267 + $0x30] sm:$0xff] %vm524, %v491
      %532 = vst.msk [vmem:[%s267 + $0x38] sm:$0xff] %vm524, %v494
      %533 = vst.msk [vmem:[%s267 + $0x40] sm:$0xff] %vm524, %v497
      %534 = vst.msk [vmem:[%s267 + $0x48] sm:$0xff] %vm524, %v500
      %535 = vst.msk [vmem:[%s267 + $0x50] sm:$0xff] %vm524, %v503
      %536 = vst.msk [vmem:[%s267 + $0x58] sm:$0xff] %vm524, %v506
      %537 = vst.msk [vmem:[%s267 + $0x60] sm:$0xff] %vm524, %v509
      %s538 = smul.u32 13, %s18
      %p539 = scmp.lt.s32.totalorder %s538, 25
      %s540 = scalar_select %p539, %s538, 25
      %s541 = smul.addr %s540, 8
      %s542 = scalar_lea.vmem %s5, %s541
      %s543 = smul.u32 13, %s18
      %p544 = scmp.lt.s32.totalorder %s543, 25
      %s545 = scalar_select %p544, %s543, 25
      %s546 = smul.addr %s545, 8
      %s547 = scalar_lea.vmem %s6, %s546
      // Predicated region
      $region41: #{classifier_multiemo_forward.1} parent=39 // pred_check
        %p548 = pneg %p146
      $region42: #{classifier_multiemo_forward.1} parent=39 // pred_check_branch
        %550 = sbr.rel (%p548) target = $region44
      $region43: #{classifier_multiemo_forward.1} parent=39 // pred_region
        %s551 = smul.u32 13, %s18
      $region44: #{classifier_multiemo_forward.1} parent=39 // pred_fallthru
        _
      // Predicated region
      $region45: #{classifier_multiemo_forward.1} parent=39 // pred_check
        %p552 = pneg %p172
      $region46: #{classifier_multiemo_forward.1} parent=39 // pred_check_branch
        %554 = sbr.rel (%p552) target = $region48
      $region47: #{classifier_multiemo_forward.1} parent=39 // pred_region
        %s555 = smul.u32 13, %s18
      $region48: #{classifier_multiemo_forward.1} parent=39 // pred_fallthru
        _
    $region40: #{classifier_multiemo_forward.1} parent=5 // pred_fallthru
      _
    %p556 = scmp.le.s32.totalorder 2, %s13
    // Predicated region
    $region49: #{classifier_multiemo_forward.1} parent=5 // pred_check
      %p557 = pneg %p556
    $region50: #{classifier_multiemo_forward.1} parent=5 // pred_check_branch
      %559 = sbr.rel (%p557) target = $region52
    $region51: #{classifier_multiemo_forward.1} parent=5 // pred_region
      %s560 = ssub.s32 %s13, 2
      // Predicated region
      $region53: #{classifier_multiemo_forward.1} parent=51 // pred_check
        %p561 = pneg %p152
      $region54: #{classifier_multiemo_forward.1} parent=51 // pred_check_branch
        %563 = sbr.rel (%p561) target = $region56
      $region55: #{classifier_multiemo_forward.1} parent=51 // pred_region
        %s564 = smul.u32 13, %s19
        %p565 = scmp.lt.s32.totalorder %s564, 25
        %s566 = scalar_select %p565, %s564, 25
        %s567 = smul.addr %s566, 8
        %s568 = scalar_lea.vmem %s5, %s567
      $region56: #{classifier_multiemo_forward.1} parent=51 // pred_fallthru
        _
      // Predicated region
      $region57: #{classifier_multiemo_forward.1} parent=51 // pred_check
        %p569 = pneg %p178
      $region58: #{classifier_multiemo_forward.1} parent=51 // pred_check_branch
        %571 = sbr.rel (%p569) target = $region60
      $region59: #{classifier_multiemo_forward.1} parent=51 // pred_region
        %s572 = smul.u32 13, %s19
        %p573 = scmp.lt.s32.totalorder %s572, 25
        %s574 = scalar_select %p573, %s572, 25
        %s575 = smul.addr %s574, 8
        %s576 = scalar_lea.vmem %s6, %s575
      $region60: #{classifier_multiemo_forward.1} parent=51 // pred_fallthru
        _
    $region52: #{classifier_multiemo_forward.1} parent=5 // pred_fallthru
      _
  $region6: #{classifier_multiemo_forward.1} parent=0 // loop_footer
    %s17 = sadd.s32 1, %s13
  $region7: #{classifier_multiemo_forward.1} parent=0 // loop_footer_branch
    %12 = sbr.rel target = $region3
  $region8: #{classifier_multiemo_forward.1} parent=0 // loop_exit
    _

</llo_original>
